<compile_context>
chip_gen: v6e
topology: v6e:2x2x1
jax: 0.10.0
libtpu: 0.0.40
codegen_flags: <defaults>
</compile_context>

<pallas_src>
import functools

import jax
import jax.numpy as jnp
from jax.experimental import pallas as pl
from jax.experimental.pallas import tpu as pltpu


def _round_up(x: int, m: int) -> int:
    return ((x + m - 1) // m) * m


def _fcqv_kernel(x_ref, w1_ref, w2_ref, aux_ref, o_ref, *, H0, H_aug, H1):
    # aux slab layout (rows): 0: w3^T   1: [b1, 0..]   2: b2   3: [b3, 0..]
    aux = aux_ref[...]                      # (4, Hmax) f32, VMEM-resident
    w3_row = aux[0:1, :H1]                  # (1, H1)
    b1 = aux[1:2, :H_aug]                   # (1, H_aug)  = [b1, zeros(output_dim)]
    b2 = aux[2:3, :H1]                      # (1, H1)
    b3 = aux[3:4, 0:1]                      # (1, 1)

    x = x_ref[...]                          # (tile_b, input_dim+output_dim), bf16/f32

    # Layer 1 (folded): one MXU pass produces [state@W1+b1, action] side by side.
    # relu is applied only to the first H0 columns (action passes through).
    h = jnp.dot(x, w1_ref[...], preferred_element_type=jnp.float32) + b1
    lane = jax.lax.broadcasted_iota(jnp.int32, h.shape, 1)
    h = jnp.where(lane < H0, jnp.maximum(h, 0.0), h)

    # Hidden layer: single matmul against the full W2 (rows = [h1 part; action part]).
    h2 = jnp.dot(h.astype(x.dtype), w2_ref[...],
                 preferred_element_type=jnp.float32) + b2
    h2 = jnp.maximum(h2, 0.0)

    # Output layer (fan-out 1), computed transposed so the result is a lane-dense
    # (1, tile_b) row. Any relayout of h2 this implies rides the XLU, which has
    # slack -- the kernel is HBM/DMA-bound.
    qT = jax.lax.dot_general(w3_row, h2, (((1,), (1,)), ((), ())),
                             preferred_element_type=jnp.float32)
    o_ref[...] = qT + b3


def fcqv_forward(state, action, params, *, tile_b: int = 4096,
                 activation_dtype=jnp.bfloat16):
    """Fused FCQV forward. state: (B, input_dim), action: (B, output_dim) -> (B, 1)."""
    w1_aug, w2, aux = params
    B, input_dim = state.shape
    output_dim = action.shape[1]
    F_aug, H_aug = w1_aug.shape
    H1 = w2.shape[1]
    H0 = H_aug - output_dim
    assert F_aug == input_dim + output_dim

    # Pack state+action into one lane slab (single activation DMA stream) and
    # stream it in the compute dtype (bf16 by default, f32 accumulation in-kernel).
    x = jnp.concatenate([state, action], axis=1).astype(activation_dtype)

    # Batch tiling: pad only to a multiple of 128, then split as evenly as
    # possible. Force >= 2 grid steps when B_pad >= 256 so v7x shards the
    # parallel axis across both TensorCores and the DMA pipeline can overlap.
    B_pad = _round_up(B, 128)
    n_steps = pl.cdiv(B_pad, tile_b)
    if B_pad >= 256:
        n_steps = max(n_steps, 2)
    tile_b = _round_up(pl.cdiv(B_pad, n_steps), 128)
    B_pad = n_steps * tile_b

    if B_pad != B:
        x = jnp.pad(x, ((0, B_pad - B), (0, 0)))

    kernel = functools.partial(_fcqv_kernel, H0=H0, H_aug=H_aug, H1=H1)

    out = pl.pallas_call(
        kernel,
        out_shape=jax.ShapeDtypeStruct((1, B_pad), jnp.float32),
        grid=(n_steps,),
        in_specs=[
            # Packed activations: blocked along batch (auto double-buffered).
            pl.BlockSpec((tile_b, F_aug), lambda i: (i, 0)),
            # Parameters: constant block index -> VMEM-resident, DMA'd once.
            pl.BlockSpec(w1_aug.shape, lambda i: (0, 0)),
            pl.BlockSpec(w2.shape, lambda i: (0, 0)),
            pl.BlockSpec(aux.shape, lambda i: (0, 0)),
        ],
        # Lane-dense output row: each grid step writes a (1, tile_b) slab.
        out_specs=pl.BlockSpec((1, tile_b), lambda i: (0, i)),
        compiler_params=pltpu.CompilerParams(
            dimension_semantics=("parallel",),
            vmem_limit_bytes=32 * 1024 * 1024),
    )(x, w1_aug.astype(activation_dtype), w2.astype(activation_dtype), aux)

    return out[0, :B].reshape(B, 1)


def init_params(key, input_dim, output_dim, hidden_dims=(32, 32)):
    """Mimics nn.Linear default init (uniform +/- 1/sqrt(fan_in)); packs params.

    Returns (W1_aug, W2, aux) where
      W1_aug = [[W1, 0], [0, I_out]]  (input_dim+output_dim, H0+output_dim)
      aux rows: 0: w3^T  1: [b1, 0]  2: b2  3: [b3, 0]
    """
    h0, h1 = hidden_dims
    ks = jax.random.split(key, 6)

    def uni(k, shape, fan_in):
        bound = 1.0 / float(fan_in) ** 0.5
        return jax.random.uniform(k, shape, jnp.float32, -bound, bound)

    # input_layer: Linear(input_dim, h0)
    w1 = uni(ks[0], (input_dim, h0), input_dim)
    b1 = uni(ks[1], (h0,), input_dim)
    # hidden_layers[0]: Linear(h0 + output_dim, h1)  (applied to concat([h1, u]))
    fan2 = h0 + output_dim
    w2 = uni(ks[2], (fan2, h1), fan2)
    b2 = uni(ks[3], (h1,), fan2)
    # output_layer: Linear(h1, 1)
    w3 = uni(ks[4], (h1, 1), h1)
    b3 = uni(ks[5], (1,), h1)

    # Fold the action passthrough into layer 1 (numerically identical: identity
    # columns carry the action untouched; relu is masked off for them in-kernel).
    h_aug = h0 + output_dim
    w1_aug = jnp.zeros((input_dim + output_dim, h_aug), jnp.float32)
    w1_aug = w1_aug.at[:input_dim, :h0].set(w1)
    w1_aug = w1_aug.at[input_dim:, h0:].set(jnp.eye(output_dim, dtype=jnp.float32))
    b1_aug = jnp.concatenate([b1, jnp.zeros((output_dim,), jnp.float32)])

    # Pack w3 / b1' / b2 / b3 into a single (4, Hmax) slab (one DMA instead of four).
    hmax = max(h_aug, h1)
    pad = lambda v: jnp.pad(v, (0, hmax - v.shape[0]))
    aux = jnp.stack([pad(w3[:, 0]), pad(b1_aug), pad(b2), pad(b3)], axis=0)

    return (w1_aug, w2, aux)


def fcqv_reference(state, action, params):
    """Plain-JAX reference (same math as the PyTorch module)."""
    w1_aug, w2, aux = params
    input_dim = state.shape[1]
    output_dim = action.shape[1]
    h_aug = w1_aug.shape[1]
    h0 = h_aug - output_dim
    h1 = w2.shape[1]
    w1 = w1_aug[:input_dim, :h0]
    b1 = aux[1, :h0]
    b2 = aux[2, :h1]
    w3 = aux[0, :h1][:, None]
    b3 = aux[3, 0]
    x = jax.nn.relu(state @ w1 + b1)
    x = jnp.concatenate([x, action], axis=1)
    x = jax.nn.relu(x @ w2 + b2)
    return x @ w3 + b3


if __name__ == "__main__":
    key = jax.random.PRNGKey(0)
    k_s1, k_a1, k_params, k_s2, k_a2 = jax.random.split(key, 5)

    input_dim, output_dim = 16, 4
    hidden_dims = (32, 32)
    params = init_params(k_params, input_dim, output_dim, hidden_dims)

    # Case 1: tiny batch (single grid step), f32 activation path (tight check).
    B1 = 8
    state1 = jax.random.normal(k_s1, (B1, input_dim), jnp.float32)
    action1 = jax.random.normal(k_a1, (B1, output_dim), jnp.float32)
    out1 = jax.block_until_ready(
        fcqv_forward(state1, action1, params, activation_dtype=jnp.float32))
    ref1 = fcqv_reference(state1, action1, params)
    assert out1.shape == (B1, 1), out1.shape
    assert jnp.allclose(out1, ref1, atol=1e-4, rtol=1e-4), (out1, ref1)

    # Case 2: ragged batch, multi-step grid, default bf16 streaming (loose check).
    B2 = 300
    state2 = jax.random.normal(k_s2, (B2, input_dim), jnp.float32)
    action2 = jax.random.normal(k_a2, (B2, output_dim), jnp.float32)
    out2 = jax.block_until_ready(fcqv_forward(state2, action2, params))
    ref2 = fcqv_reference(state2, action2, params)
    assert out2.shape == (B2, 1), out2.shape
    assert jnp.allclose(out2, ref2, atol=3e-2, rtol=3e-2), \
        float(jnp.max(jnp.abs(out2 - ref2)))

    print("KERNEL_OK")
</pallas_src>

<mosaic_0001>
module attributes {stable_mosaic.version = 11 : i64} {
  func.func @_fcqv_kernel(%arg0: i32, %arg1: memref<128x20xf32, #tpu.memory_space<vmem>>, %arg2: memref<20x36xf32, #tpu.memory_space<vmem>>, %arg3: memref<36x32xf32, #tpu.memory_space<vmem>>, %arg4: memref<4x36xf32, #tpu.memory_space<vmem>>, %arg5: memref<1x128xf32, #tpu.memory_space<vmem>>) attributes {dimension_semantics = [#tpu.dimension_semantics<parallel>], iteration_bounds = array<i64: 1>, scalar_prefetch = 0 : i64, scratch_operands = 0 : i64, tpu.core_type = #tpu.core_type<tc>, window_params = [{transform_indices = @transform_0, window_bounds = array<i64: 128, 20>}, {pipeline_mode = #tpu.pipeline_mode<synchronous>, transform_indices = @transform_1, window_bounds = array<i64: 20, 36>}, {pipeline_mode = #tpu.pipeline_mode<synchronous>, transform_indices = @transform_2, window_bounds = array<i64: 36, 32>}, {pipeline_mode = #tpu.pipeline_mode<synchronous>, transform_indices = @transform_3, window_bounds = array<i64: 4, 36>}, {transform_indices = @transform_4, window_bounds = array<i64: 1, 128>}]} {
    %c0 = arith.constant 0 : index
    %c0_0 = arith.constant 0 : index
    %0 = vector.load %arg4[%c0, %c0_0] : memref<4x36xf32, #tpu.memory_space<vmem>>, vector<4x36xf32>
    %1 = vector.extract_strided_slice %0 {offsets = [0, 0], sizes = [1, 32], strides = [1, 1]} : vector<4x36xf32> to vector<1x32xf32>
    %2 = vector.extract_strided_slice %0 {offsets = [1, 0], sizes = [1, 36], strides = [1, 1]} : vector<4x36xf32> to vector<1x36xf32>
    %3 = vector.extract_strided_slice %0 {offsets = [2, 0], sizes = [1, 32], strides = [1, 1]} : vector<4x36xf32> to vector<1x32xf32>
    %4 = vector.extract_strided_slice %0 {offsets = [3, 0], sizes = [1, 1], strides = [1, 1]} : vector<4x36xf32> to vector<1x1xf32>
    %c0_1 = arith.constant 0 : index
    %c0_2 = arith.constant 0 : index
    %5 = vector.load %arg1[%c0_1, %c0_2] : memref<128x20xf32, #tpu.memory_space<vmem>>, vector<128x20xf32>
    %c0_3 = arith.constant 0 : index
    %c0_4 = arith.constant 0 : index
    %6 = vector.load %arg2[%c0_3, %c0_4] : memref<20x36xf32, #tpu.memory_space<vmem>>, vector<20x36xf32>
    %cst = arith.constant dense<0.000000e+00> : vector<128x36xf32>
    %7 = tpu.matmul %5, %6, %cst {dimension_numbers = #tpu.dot_dimension_numbers<[1], [0], [0], [1], [0, 0, 1, 1], [], []>} : vector<128x20xf32>, vector<20x36xf32>, vector<128x36xf32> -> vector<128x36xf32>
    %8 = vector.broadcast %2 : vector<1x36xf32> to vector<128x36xf32>
    %9 = arith.addf %7, %8 : vector<128x36xf32>
    %10 = tpu.iota {dimensions = array<i32: 1>} : vector<128x36xi32>
    %c32_i32 = arith.constant 32 : i32
    %11 = vector.broadcast %c32_i32 : i32 to vector<128x36xi32>
    %12 = arith.cmpi slt, %10, %11 : vector<128x36xi32>
    %cst_5 = arith.constant 0.000000e+00 : f32
    %13 = vector.broadcast %cst_5 : f32 to vector<128x36xf32>
    %14 = arith.maximumf %9, %13 : vector<128x36xf32>
    %15 = arith.select %12, %14, %9 : vector<128x36xi1>, vector<128x36xf32>
    %c0_6 = arith.constant 0 : index
    %c0_7 = arith.constant 0 : index
    %16 = vector.load %arg3[%c0_6, %c0_7] : memref<36x32xf32, #tpu.memory_space<vmem>>, vector<36x32xf32>
    %cst_8 = arith.constant dense<0.000000e+00> : vector<128x32xf32>
    %17 = tpu.matmul %15, %16, %cst_8 {dimension_numbers = #tpu.dot_dimension_numbers<[1], [0], [0], [1], [0, 0, 1, 1], [], []>} : vector<128x36xf32>, vector<36x32xf32>, vector<128x32xf32> -> vector<128x32xf32>
    %18 = vector.broadcast %3 : vector<1x32xf32> to vector<128x32xf32>
    %19 = arith.addf %17, %18 : vector<128x32xf32>
    %cst_9 = arith.constant 0.000000e+00 : f32
    %20 = vector.broadcast %cst_9 : f32 to vector<128x32xf32>
    %21 = arith.maximumf %19, %20 : vector<128x32xf32>
    %cst_10 = arith.constant dense<0.000000e+00> : vector<1x128xf32>
    %22 = tpu.matmul %1, %21, %cst_10 {dimension_numbers = #tpu.dot_dimension_numbers<[1], [1], [0], [0], [0, 0, 1, 0], [], []>} : vector<1x32xf32>, vector<128x32xf32>, vector<1x128xf32> -> vector<1x128xf32>
    %23 = vector.broadcast %4 : vector<1x1xf32> to vector<1x128xf32>
    %24 = arith.addf %22, %23 : vector<1x128xf32>
    %c0_11 = arith.constant 0 : index
    %c0_12 = arith.constant 0 : index
    %25 = vector.load %arg5[%c0_11, %c0_12] : memref<1x128xf32, #tpu.memory_space<vmem>>, vector<1x128xf32>
    tpu.vector_store %arg5[%c0_11, %c0_12], %24 {strides = array<i32>} : memref<1x128xf32, #tpu.memory_space<vmem>>, vector<1x128xf32>,
    return
  }
  func.func @transform_0(%arg0: i32) -> (i32, i32) {
    %c0_i32 = arith.constant 0 : i32
    %c0_i32_0 = arith.constant 0 : i32
    return %arg0, %c0_i32 : i32, i32
  }
  func.func @transform_1(%arg0: i32) -> (i32, i32) {
    %c0_i32 = arith.constant 0 : i32
    %c0_i32_0 = arith.constant 0 : i32
    %c0_i32_1 = arith.constant 0 : i32
    return %c0_i32, %c0_i32_0 : i32, i32
  }
  func.func @transform_2(%arg0: i32) -> (i32, i32) {
    %c0_i32 = arith.constant 0 : i32
    %c0_i32_0 = arith.constant 0 : i32
    %c0_i32_1 = arith.constant 0 : i32
    return %c0_i32, %c0_i32_0 : i32, i32
  }
  func.func @transform_3(%arg0: i32) -> (i32, i32) {
    %c0_i32 = arith.constant 0 : i32
    %c0_i32_0 = arith.constant 0 : i32
    %c0_i32_1 = arith.constant 0 : i32
    return %c0_i32, %c0_i32_0 : i32, i32
  }
  func.func @transform_4(%arg0: i32) -> (i32, i32) {
    %c0_i32 = arith.constant 0 : i32
    %c0_i32_0 = arith.constant 0 : i32
    return %c0_i32, %arg0 : i32, i32
  }
}

</mosaic_0001>

<llo_original>
// kernel: tpu_custom_call.1
$region0: #{tpu_custom_call.1}
  #allocation0 [shape = 'u32[]', space=smem, size = 0x4, offset = 0x4, fixed_abs, tag = 'smem constant byte address 0x4 - core index']
  #allocation1 [shape = 'u32[144,128]{1,0:T(1,128)}', space=vmem, size = 0x12000, scoped, tag = 'internal scratch']
  %s0 = inlined_call_operand.vmem [shape: f32[128,20], index: 0, kind: input, shape index: {}]
  %s1 = inlined_call_operand.vmem [shape: f32[20,36], index: 1, kind: input, shape index: {}]
  %s2 = inlined_call_operand.vmem [shape: f32[36,32], index: 2, kind: input, shape index: {}]
  %s3 = inlined_call_operand.vmem [shape: f32[4,36], index: 3, kind: input, shape index: {}]
  %s4 = inlined_call_operand.hbm [shape: f32[1,128], index: 4, kind: output, shape index: {}]
  %s5 = sld [smem:[#allocation0]]
  $region26: #{tpu_custom_call.1} parent=0
    _
  %s7 = ssub.s32 1, %s5
  %s8 = scalar_select 0, %s7, %s5
  $region1: #{tpu_custom_call.1} parent=0
    #allocation2 [shape = 'u8[512]{0}', space=vmem, size = 0x400, scoped, tag = 'output window, operand 0, single buffered']
    #allocation3 [shape = 's32[1]{0}', space=sflag, size = 0x4, scoped, tag = 'scoped memory for tpu_custom_call.1']
    %9 = vsyncpa [#allocation3], 0
    // Predicated region
    $region2: #{tpu_custom_call.1} parent=1 // pred_check
      _
    $region3: #{tpu_custom_call.1} parent=1 // pred_check_branch
      %11 = sbr.rel (0) target = $region5
    $region4: #{tpu_custom_call.1} parent=1 // pred_region
      _
    $region5: #{tpu_custom_call.1} parent=1 // pred_fallthru
      _
    // Predicated region
    $region6: #{tpu_custom_call.1} parent=1 // pred_check
      _
    $region7: #{tpu_custom_call.1} parent=1 // pred_check_branch
      %13 = sbr.rel (0) target = $region9
    $region8: #{tpu_custom_call.1} parent=1 // pred_region
      _
    $region9: #{tpu_custom_call.1} parent=1 // pred_fallthru
      _
    // Predicated region
    $region10: #{tpu_custom_call.1} parent=1 // pred_check
      _
    $region11: #{tpu_custom_call.1} parent=1 // pred_check_branch
      %15 = sbr.rel (0) target = $region13
    $region12: #{tpu_custom_call.1} parent=1 // pred_region
      _
    $region13: #{tpu_custom_call.1} parent=1 // pred_fallthru
      _
    // Predicated region
    $region14: #{tpu_custom_call.1} parent=1 // pred_check
      _
    $region15: #{tpu_custom_call.1} parent=1 // pred_check_branch
      %17 = sbr.rel (0) target = $region17
    $region16: #{tpu_custom_call.1} parent=1 // pred_region
      _
    $region17: #{tpu_custom_call.1} parent=1 // pred_fallthru
      _
    %v18 = vld [vmem:[%s3] sm:$0xf]
    %v19 = vld [vmem:[%s0] sm:$0xff]
    %v20 = vld [vmem:[%s0 + $0x8] sm:$0xff]
    %v21 = vld [vmem:[%s0 + $0x10] sm:$0xff]
    %v22 = vld [vmem:[%s0 + $0x18] sm:$0xff]
    %v23 = vld [vmem:[%s0 + $0x20] sm:$0xff]
    %v24 = vld [vmem:[%s0 + $0x28] sm:$0xff]
    %v25 = vld [vmem:[%s0 + $0x30] sm:$0xff]
    %v26 = vld [vmem:[%s0 + $0x38] sm:$0xff]
    %v27 = vld [vmem:[%s0 + $0x40] sm:$0xff]
    %v28 = vld [vmem:[%s0 + $0x48] sm:$0xff]
    %v29 = vld [vmem:[%s0 + $0x50] sm:$0xff]
    %v30 = vld [vmem:[%s0 + $0x58] sm:$0xff]
    %v31 = vld [vmem:[%s0 + $0x60] sm:$0xff]
    %v32 = vld [vmem:[%s0 + $0x68] sm:$0xff]
    %v33 = vld [vmem:[%s0 + $0x70] sm:$0xff]
    %v34 = vld [vmem:[%s0 + $0x78] sm:$0xff]
    %v35 = vld [vmem:[%s1] sm:$0xff]
    %v36 = vld [vmem:[%s1 + $0x8] sm:$0xff]
    %v37 = vld [vmem:[%s1 + $0x10] sm:$0xf]
    %v38 = vlaneseq
    %v39 = vshrl.u32 %v38, 7
    %v40 = vsub.s32 1, %v39
    %v41 = vrot.slane %v18, %v40
    %vm42 = vcmask 162816
    %v44 = vsel %vm42, %v19, 0
    %v47 = vsel %vm42, %v20, 0
    %v50 = vsel %vm42, %v21, 0
    %v53 = vsel %vm42, %v22, 0
    %v56 = vsel %vm42, %v23, 0
    %v59 = vsel %vm42, %v24, 0
    %v62 = vsel %vm42, %v25, 0
    %v65 = vsel %vm42, %v26, 0
    %v68 = vsel %vm42, %v27, 0
    %v71 = vsel %vm42, %v28, 0
    %v74 = vsel %vm42, %v29, 0
    %v77 = vsel %vm42, %v30, 0
    %v80 = vsel %vm42, %v31, 0
    %v83 = vsel %vm42, %v32, 0
    %v86 = vsel %vm42, %v33, 0
    %v89 = vsel %vm42, %v34, 0
    %vm91 = vcmask 1043456
    %v93 = vsel %vm91, %v37, 0
    %95 = vmatprep.subr.mxu0 0.0
    %96 = vmatpush1.msra.mxu0 0.0
    %97 = vmatprep.subr.mxu0 0.0
    %98 = vmatpush1.msra.mxu0 0.0
    %99 = vmatprep.subr.mxu0 0.0
    %100 = vmatpush1.msra.mxu0 0.0
    %101 = vmatprep.subr.mxu0 0.0
    %102 = vmatpush1.msra.mxu0 0.0
    %103 = vmatprep.subr.mxu0 0.0
    %104 = vmatpush1.msra.mxu0 0.0
    %105 = vmatprep.subr.mxu0 0.0
    %106 = vmatpush1.msra.mxu0 0.0
    %107 = vmatprep.subr.mxu0 0.0
    %108 = vmatpush1.msra.mxu0 0.0
    %109 = vmatprep.subr.mxu0 0.0
    %110 = vmatpush1.msra.mxu0 0.0
    %111 = vmatprep.subr.mxu0 0.0
    %112 = vmatpush1.msra.mxu0 0.0
    %113 = vmatprep.subr.mxu0 0.0
    %114 = vmatpush1.msra.mxu0 0.0
    %115 = vmatprep.subr.mxu0 0.0
    %116 = vmatpush1.msra.mxu0 0.0
    %117 = vmatprep.subr.mxu0 0.0
    %118 = vmatpush1.msra.mxu0 0.0
    %119 = vmatprep.subr.mxu0 0.0
    %120 = vmatpush1.msra.mxu0 0.0
    %121 = vmatprep.subr.mxu0 0.0
    %122 = vmatpush1.msra.mxu0 %v93
    %123 = vmatprep.subr.mxu0 0.0
    %124 = vmatpush1.msra.mxu0 %v36
    %125 = vmatprep.subr.mxu0 0.0
    %126 = vmatpush1.msra.mxu0 %v35
    %127 = vmatprep.subr.mxu0 0.0
    %128 = vmatpush2.msra.mxu0 0.0
    %129 = vmatprep.subr.mxu0 0.0
    %130 = vmatpush2.msra.mxu0 0.0
    %131 = vmatprep.subr.mxu0 0.0
    %132 = vmatpush2.msra.mxu0 0.0
    %133 = vmatprep.subr.mxu0 0.0
    %134 = vmatpush2.msra.mxu0 0.0
    %135 = vmatprep.subr.mxu0 0.0
    %136 = vmatpush2.msra.mxu0 0.0
    %137 = vmatprep.subr.mxu0 0.0
    %138 = vmatpush2.msra.mxu0 0.0
    %139 = vmatprep.subr.mxu0 0.0
    %140 = vmatpush2.msra.mxu0 0.0
    %141 = vmatprep.subr.mxu0 0.0
    %142 = vmatpush2.msra.mxu0 0.0
    %143 = vmatprep.subr.mxu0 0.0
    %144 = vmatpush2.msra.mxu0 0.0
    %145 = vmatprep.subr.mxu0 0.0
    %146 = vmatpush2.msra.mxu0 0.0
    %147 = vmatprep.subr.mxu0 0.0
    %148 = vmatpush2.msra.mxu0 0.0
    %149 = vmatprep.subr.mxu0 0.0
    %150 = vmatpush2.msra.mxu0 0.0
    %151 = vmatprep.subr.mxu0 0.0
    %152 = vmatpush2.msra.mxu0 0.0
    %153 = vmatprep.subr.mxu0 0.0
    %154 = vmatpush2.msra.mxu0 0.0
    %155 = vmatprep.subr.mxu0 0.0
    %156 = vmatpush2.msra.mxu0 0.0
    %157 = vmatprep.subr.mxu0 0.0
    %158 = vmatpush2.msra.mxu0 0.0
    %159 = vmatprep.mubr.f32.mxu0 0.0
    %160 = vmatmul.mubr.f32.gmra.mxu0 %v44
    %v161 = vpop.f32.mrf.mxu0
    %v162 = vadd.f32 %v41, %v161
    %v163 = vpop.f32.mrf.mxu0
    %164 = vmatprep.mubr.f32.mxu0 0.0
    %165 = vmatmul.mubr.f32.gmra.mxu0 %v47
    %v166 = vpop.f32.mrf.mxu0
    %v167 = vadd.f32 %v41, %v166
    %v168 = vpop.f32.mrf.mxu0
    %169 = vmatprep.mubr.f32.mxu0 0.0
    %170 = vmatmul.mubr.f32.gmra.mxu0 %v50
    %v171 = vpop.f32.mrf.mxu0
    %v172 = vadd.f32 %v41, %v171
    %v173 = vpop.f32.mrf.mxu0
    %174 = vmatprep.mubr.f32.mxu0 0.0
    %175 = vmatmul.mubr.f32.gmra.mxu0 %v53
    %v176 = vpop.f32.mrf.mxu0
    %v177 = vadd.f32 %v41, %v176
    %v178 = vpop.f32.mrf.mxu0
    %179 = vmatprep.mubr.f32.mxu0 0.0
    %180 = vmatmul.mubr.f32.gmra.mxu0 %v56
    %v181 = vpop.f32.mrf.mxu0
    %v182 = vadd.f32 %v41, %v181
    %v183 = vpop.f32.mrf.mxu0
    %184 = vmatprep.mubr.f32.mxu0 0.0
    %185 = vmatmul.mubr.f32.gmra.mxu0 %v59
    %v186 = vpop.f32.mrf.mxu0
    %v187 = vadd.f32 %v41, %v186
    %v188 = vpop.f32.mrf.mxu0
    %189 = vmatprep.mubr.f32.mxu0 0.0
    %190 = vmatmul.mubr.f32.gmra.mxu0 %v62
    %v191 = vpop.f32.mrf.mxu0
    %v192 = vadd.f32 %v41, %v191
    %v193 = vpop.f32.mrf.mxu0
    %194 = vmatprep.mubr.f32.mxu0 0.0
    %195 = vmatmul.mubr.f32.gmra.mxu0 %v65
    %v196 = vpop.f32.mrf.mxu0
    %v197 = vadd.f32 %v41, %v196
    %v198 = vpop.f32.mrf.mxu0
    %199 = vmatprep.mubr.f32.mxu0 0.0
    %200 = vmatmul.mubr.f32.gmra.mxu0 %v68
    %v201 = vpop.f32.mrf.mxu0
    %v202 = vadd.f32 %v41, %v201
    %v203 = vpop.f32.mrf.mxu0
    %204 = vmatprep.mubr.f32.mxu0 0.0
    %205 = vmatmul.mubr.f32.gmra.mxu0 %v71
    %v206 = vpop.f32.mrf.mxu0
    %v207 = vadd.f32 %v41, %v206
    %v208 = vpop.f32.mrf.mxu0
    %209 = vmatprep.mubr.f32.mxu0 0.0
    %210 = vmatmul.mubr.f32.gmra.mxu0 %v74
    %v211 = vpop.f32.mrf.mxu0
    %v212 = vadd.f32 %v41, %v211
    %v213 = vpop.f32.mrf.mxu0
    %214 = vmatprep.mubr.f32.mxu0 0.0
    %215 = vmatmul.mubr.f32.gmra.mxu0 %v77
    %v216 = vpop.f32.mrf.mxu0
    %v217 = vadd.f32 %v41, %v216
    %v218 = vpop.f32.mrf.mxu0
    %219 = vmatprep.mubr.f32.mxu0 0.0
    %220 = vmatmul.mubr.f32.gmra.mxu0 %v80
    %v221 = vpop.f32.mrf.mxu0
    %v222 = vadd.f32 %v41, %v221
    %v223 = vpop.f32.mrf.mxu0
    %224 = vmatprep.mubr.f32.mxu0 0.0
    %225 = vmatmul.mubr.f32.gmra.mxu0 %v83
    %v226 = vpop.f32.mrf.mxu0
    %v227 = vadd.f32 %v41, %v226
    %v228 = vpop.f32.mrf.mxu0
    %229 = vmatprep.mubr.f32.mxu0 0.0
    %230 = vmatmul.mubr.f32.gmra.mxu0 %v86
    %v231 = vpop.f32.mrf.mxu0
    %v232 = vadd.f32 %v41, %v231
    %v233 = vpop.f32.mrf.mxu0
    %234 = vmatprep.mubr.f32.mxu0 0.0
    %235 = vmatmul.mubr.f32.gmra.mxu0 %v89
    %v236 = vpop.f32.mrf.mxu0
    %v237 = vadd.f32 %v41, %v236
    %v238 = vpop.f32.mrf.mxu0
    %239 = vdwg.mxu0
    %v240 = vlaneseq
    %v241 = vand.u32 %v240, 127
    %vm242 = vcmp.lt.s32.totalorder %v241, 32
    %v243 = vmax.f32 %v162, 0.0
    %v244 = vmax.f32 %v167, 0.0
    %v245 = vmax.f32 %v172, 0.0
    %v246 = vmax.f32 %v177, 0.0
    %v247 = vmax.f32 %v182, 0.0
    %v248 = vmax.f32 %v187, 0.0
    %v249 = vmax.f32 %v192, 0.0
    %v250 = vmax.f32 %v197, 0.0
    %v251 = vmax.f32 %v202, 0.0
    %v252 = vmax.f32 %v207, 0.0
    %v253 = vmax.f32 %v212, 0.0
    %v254 = vmax.f32 %v217, 0.0
    %v255 = vmax.f32 %v222, 0.0
    %v256 = vmax.f32 %v227, 0.0
    %v257 = vmax.f32 %v232, 0.0
    %v258 = vmax.f32 %v237, 0.0
    %v259 = vsel %vm242, %v243, %v162
    %v260 = vsel %vm242, %v244, %v167
    %v261 = vsel %vm242, %v245, %v172
    %v262 = vsel %vm242, %v246, %v177
    %v263 = vsel %vm242, %v247, %v182
    %v264 = vsel %vm242, %v248, %v187
    %v265 = vsel %vm242, %v249, %v192
    %v266 = vsel %vm242, %v250, %v197
    %v267 = vsel %vm242, %v251, %v202
    %v268 = vsel %vm242, %v252, %v207
    %v269 = vsel %vm242, %v253, %v212
    %v270 = vsel %vm242, %v254, %v217
    %v271 = vsel %vm242, %v255, %v222
    %v272 = vsel %vm242, %v256, %v227
    %v273 = vsel %vm242, %v257, %v232
    %v274 = vsel %vm242, %v258, %v237
    %v275 = vld [vmem:[%s2] sm:$0xff]
    %v276 = vld [vmem:[%s2 + $0x8] sm:$0xff]
    %v277 = vld [vmem:[%s2 + $0x10] sm:$0xff]
    %v278 = vld [vmem:[%s2 + $0x18] sm:$0xff]
    %v279 = vld [vmem:[%s2 + $0x20] sm:$0xf]
    %v280 = vlaneseq
    %v281 = vshrl.u32 %v280, 7
    %v282 = vsub.s32 2, %v281
    %v283 = vrot.slane %v18, %v282
    %vm284 = vcmask 293888
    %v286 = vsel %vm284, %v259, 0
    %v289 = vsel %vm284, %v260, 0
    %v292 = vsel %vm284, %v261, 0
    %v295 = vsel %vm284, %v262, 0
    %v298 = vsel %vm284, %v263, 0
    %v301 = vsel %vm284, %v264, 0
    %v304 = vsel %vm284, %v265, 0
    %v307 = vsel %vm284, %v266, 0
    %v310 = vsel %vm284, %v267, 0
    %v313 = vsel %vm284, %v268, 0
    %v316 = vsel %vm284, %v269, 0
    %v319 = vsel %vm284, %v270, 0
    %v322 = vsel %vm284, %v271, 0
    %v325 = vsel %vm284, %v272, 0
    %v328 = vsel %vm284, %v273, 0
    %v331 = vsel %vm284, %v274, 0
    %v334 = vsel %vm91, %v279, 0
    %336 = vmatprep.subr.mxu0 0.0
    %337 = vmatpush1.msra.mxu0 0.0
    %338 = vmatprep.subr.mxu0 0.0
    %339 = vmatpush1.msra.mxu0 0.0
    %340 = vmatprep.subr.mxu0 0.0
    %341 = vmatpush1.msra.mxu0 0.0
    %342 = vmatprep.subr.mxu0 0.0
    %343 = vmatpush1.msra.mxu0 0.0
    %344 = vmatprep.subr.mxu0 0.0
    %345 = vmatpush1.msra.mxu0 0.0
    %346 = vmatprep.subr.mxu0 0.0
    %347 = vmatpush1.msra.mxu0 0.0
    %348 = vmatprep.subr.mxu0 0.0
    %349 = vmatpush1.msra.mxu0 0.0
    %350 = vmatprep.subr.mxu0 0.0
    %351 = vmatpush1.msra.mxu0 0.0
    %352 = vmatprep.subr.mxu0 0.0
    %353 = vmatpush1.msra.mxu0 0.0
    %354 = vmatprep.subr.mxu0 0.0
    %355 = vmatpush1.msra.mxu0 0.0
    %356 = vmatprep.subr.mxu0 0.0
    %357 = vmatpush1.msra.mxu0 0.0
    %358 = vmatprep.subr.mxu0 0.0
    %359 = vmatpush1.msra.mxu0 %v334
    %360 = vmatprep.subr.mxu0 0.0
    %361 = vmatpush1.msra.mxu0 %v278
    %362 = vmatprep.subr.mxu0 0.0
    %363 = vmatpush1.msra.mxu0 %v277
    %364 = vmatprep.subr.mxu0 0.0
    %365 = vmatpush1.msra.mxu0 %v276
    %366 = vmatprep.subr.mxu0 0.0
    %367 = vmatpush1.msra.mxu0 %v275
    %368 = vmatprep.subr.mxu0 0.0
    %369 = vmatpush2.msra.mxu0 0.0
    %370 = vmatprep.subr.mxu0 0.0
    %371 = vmatpush2.msra.mxu0 0.0
    %372 = vmatprep.subr.mxu0 0.0
    %373 = vmatpush2.msra.mxu0 0.0
    %374 = vmatprep.subr.mxu0 0.0
    %375 = vmatpush2.msra.mxu0 0.0
    %376 = vmatprep.subr.mxu0 0.0
    %377 = vmatpush2.msra.mxu0 0.0
    %378 = vmatprep.subr.mxu0 0.0
    %379 = vmatpush2.msra.mxu0 0.0
    %380 = vmatprep.subr.mxu0 0.0
    %381 = vmatpush2.msra.mxu0 0.0
    %382 = vmatprep.subr.mxu0 0.0
    %383 = vmatpush2.msra.mxu0 0.0
    %384 = vmatprep.subr.mxu0 0.0
    %385 = vmatpush2.msra.mxu0 0.0
    %386 = vmatprep.subr.mxu0 0.0
    %387 = vmatpush2.msra.mxu0 0.0
    %388 = vmatprep.subr.mxu0 0.0
    %389 = vmatpush2.msra.mxu0 0.0
    %390 = vmatprep.subr.mxu0 0.0
    %391 = vmatpush2.msra.mxu0 0.0
    %392 = vmatprep.subr.mxu0 0.0
    %393 = vmatpush2.msra.mxu0 0.0
    %394 = vmatprep.subr.mxu0 0.0
    %395 = vmatpush2.msra.mxu0 0.0
    %396 = vmatprep.subr.mxu0 0.0
    %397 = vmatpush2.msra.mxu0 0.0
    %398 = vmatprep.subr.mxu0 0.0
    %399 = vmatpush2.msra.mxu0 0.0
    %400 = vmatprep.mubr.f32.mxu0 0.0
    %401 = vmatmul.mubr.f32.gmra.mxu0 %v286
    %v402 = vpop.f32.mrf.mxu0
    %v403 = vadd.f32 %v283, %v402
    %v404 = vpop.f32.mrf.mxu0
    %405 = vmatprep.mubr.f32.mxu0 0.0
    %406 = vmatmul.mubr.f32.gmra.mxu0 %v289
    %v407 = vpop.f32.mrf.mxu0
    %v408 = vadd.f32 %v283, %v407
    %v409 = vpop.f32.mrf.mxu0
    %410 = vmatprep.mubr.f32.mxu0 0.0
    %411 = vmatmul.mubr.f32.gmra.mxu0 %v292
    %v412 = vpop.f32.mrf.mxu0
    %v413 = vadd.f32 %v283, %v412
    %v414 = vpop.f32.mrf.mxu0
    %415 = vmatprep.mubr.f32.mxu0 0.0
    %416 = vmatmul.mubr.f32.gmra.mxu0 %v295
    %v417 = vpop.f32.mrf.mxu0
    %v418 = vadd.f32 %v283, %v417
    %v419 = vpop.f32.mrf.mxu0
    %420 = vmatprep.mubr.f32.mxu0 0.0
    %421 = vmatmul.mubr.f32.gmra.mxu0 %v298
    %v422 = vpop.f32.mrf.mxu0
    %v423 = vadd.f32 %v283, %v422
    %v424 = vpop.f32.mrf.mxu0
    %425 = vmatprep.mubr.f32.mxu0 0.0
    %426 = vmatmul.mubr.f32.gmra.mxu0 %v301
    %v427 = vpop.f32.mrf.mxu0
    %v428 = vadd.f32 %v283, %v427
    %v429 = vpop.f32.mrf.mxu0
    %430 = vmatprep.mubr.f32.mxu0 0.0
    %431 = vmatmul.mubr.f32.gmra.mxu0 %v304
    %v432 = vpop.f32.mrf.mxu0
    %v433 = vadd.f32 %v283, %v432
    %v434 = vpop.f32.mrf.mxu0
    %435 = vmatprep.mubr.f32.mxu0 0.0
    %436 = vmatmul.mubr.f32.gmra.mxu0 %v307
    %v437 = vpop.f32.mrf.mxu0
    %v438 = vadd.f32 %v283, %v437
    %v439 = vpop.f32.mrf.mxu0
    %440 = vmatprep.mubr.f32.mxu0 0.0
    %441 = vmatmul.mubr.f32.gmra.mxu0 %v310
    %v442 = vpop.f32.mrf.mxu0
    %v443 = vadd.f32 %v283, %v442
    %v444 = vpop.f32.mrf.mxu0
    %445 = vmatprep.mubr.f32.mxu0 0.0
    %446 = vmatmul.mubr.f32.gmra.mxu0 %v313
    %v447 = vpop.f32.mrf.mxu0
    %v448 = vadd.f32 %v283, %v447
    %v449 = vpop.f32.mrf.mxu0
    %450 = vmatprep.mubr.f32.mxu0 0.0
    %451 = vmatmul.mubr.f32.gmra.mxu0 %v316
    %v452 = vpop.f32.mrf.mxu0
    %v453 = vadd.f32 %v283, %v452
    %v454 = vpop.f32.mrf.mxu0
    %455 = vmatprep.mubr.f32.mxu0 0.0
    %456 = vmatmul.mubr.f32.gmra.mxu0 %v319
    %v457 = vpop.f32.mrf.mxu0
    %v458 = vadd.f32 %v283, %v457
    %v459 = vpop.f32.mrf.mxu0
    %460 = vmatprep.mubr.f32.mxu0 0.0
    %461 = vmatmul.mubr.f32.gmra.mxu0 %v322
    %v462 = vpop.f32.mrf.mxu0
    %v463 = vadd.f32 %v283, %v462
    %v464 = vpop.f32.mrf.mxu0
    %465 = vmatprep.mubr.f32.mxu0 0.0
    %466 = vmatmul.mubr.f32.gmra.mxu0 %v325
    %v467 = vpop.f32.mrf.mxu0
    %v468 = vadd.f32 %v283, %v467
    %v469 = vpop.f32.mrf.mxu0
    %470 = vmatprep.mubr.f32.mxu0 0.0
    %471 = vmatmul.mubr.f32.gmra.mxu0 %v328
    %v472 = vpop.f32.mrf.mxu0
    %v473 = vadd.f32 %v283, %v472
    %v474 = vpop.f32.mrf.mxu0
    %475 = vmatprep.mubr.f32.mxu0 0.0
    %476 = vmatmul.mubr.f32.gmra.mxu0 %v331
    %v477 = vpop.f32.mrf.mxu0
    %v478 = vadd.f32 %v283, %v477
    %v479 = vpop.f32.mrf.mxu0
    %480 = vdwg.mxu0
    %v481 = vmax.f32 %v403, 0.0
    %v482 = vmax.f32 %v408, 0.0
    %v483 = vmax.f32 %v413, 0.0
    %v484 = vmax.f32 %v418, 0.0
    %v485 = vmax.f32 %v423, 0.0
    %v486 = vmax.f32 %v428, 0.0
    %v487 = vmax.f32 %v433, 0.0
    %v488 = vmax.f32 %v438, 0.0
    %v489 = vmax.f32 %v443, 0.0
    %v490 = vmax.f32 %v448, 0.0
    %v491 = vmax.f32 %v453, 0.0
    %v492 = vmax.f32 %v458, 0.0
    %v493 = vmax.f32 %v463, 0.0
    %v494 = vmax.f32 %v468, 0.0
    %v495 = vmax.f32 %v473, 0.0
    %v496 = vmax.f32 %v478, 0.0
    %498 = vset.pattern.permute.xlu0 0
    %499 = vperm.xlu0 %498, %v18
    %v500 = vpop.permute.xlu0 %499
    %v501 = vrot.slane %v500, 3
    %vm503 = vcmask 261120
    %v504 = vsel %vm503, %v18, 0
    %v507 = vsel %vm503, %v481, 0
    %v510 = vsel %vm503, %v482, 0
    %v513 = vsel %vm503, %v483, 0
    %v516 = vsel %vm503, %v484, 0
    %v519 = vsel %vm503, %v485, 0
    %v522 = vsel %vm503, %v486, 0
    %v525 = vsel %vm503, %v487, 0
    %v528 = vsel %vm503, %v488, 0
    %v531 = vsel %vm503, %v489, 0
    %v534 = vsel %vm503, %v490, 0
    %v537 = vsel %vm503, %v491, 0
    %v540 = vsel %vm503, %v492, 0
    %v543 = vsel %vm503, %v493, 0
    %v546 = vsel %vm503, %v494, 0
    %v549 = vsel %vm503, %v495, 0
    %v552 = vsel %vm503, %v496, 0
    %554 = vmatprep.subr.mxu0 0.0
    %555 = vmatpush1.xpose.msra.mxu0 %v552
    %556 = vmatprep.subr.mxu0 0.0
    %557 = vmatpush1.xpose.msra.mxu0 %v549
    %558 = vmatprep.subr.mxu0 0.0
    %559 = vmatpush1.xpose.msra.mxu0 %v546
    %560 = vmatprep.subr.mxu0 0.0
    %561 = vmatpush1.xpose.msra.mxu0 %v543
    %562 = vmatprep.subr.mxu0 0.0
    %563 = vmatpush1.xpose.msra.mxu0 %v540
    %564 = vmatprep.subr.mxu0 0.0
    %565 = vmatpush1.xpose.msra.mxu0 %v537
    %566 = vmatprep.subr.mxu0 0.0
    %567 = vmatpush1.xpose.msra.mxu0 %v534
    %568 = vmatprep.subr.mxu0 0.0
    %569 = vmatpush1.xpose.msra.mxu0 %v531
    %570 = vmatprep.subr.mxu0 0.0
    %571 = vmatpush1.xpose.msra.mxu0 %v528
    %572 = vmatprep.subr.mxu0 0.0
    %573 = vmatpush1.xpose.msra.mxu0 %v525
    %574 = vmatprep.subr.mxu0 0.0
    %575 = vmatpush1.xpose.msra.mxu0 %v522
    %576 = vmatprep.subr.mxu0 0.0
    %577 = vmatpush1.xpose.msra.mxu0 %v519
    %578 = vmatprep.subr.mxu0 0.0
    %579 = vmatpush1.xpose.msra.mxu0 %v516
    %580 = vmatprep.subr.mxu0 0.0
    %581 = vmatpush1.xpose.msra.mxu0 %v513
    %582 = vmatprep.subr.mxu0 0.0
    %583 = vmatpush1.xpose.msra.mxu0 %v510
    %584 = vmatprep.subr.mxu0 0.0
    %585 = vmatpush1.xpose.msra.mxu0 %v507
    %586 = vmatprep.subr.mxu0 0.0
    %587 = vmatpush2.xpose.msra.mxu0 0.0
    %588 = vmatprep.subr.mxu0 0.0
    %589 = vmatpush2.xpose.msra.mxu0 0.0
    %590 = vmatprep.subr.mxu0 0.0
    %591 = vmatpush2.xpose.msra.mxu0 0.0
    %592 = vmatprep.subr.mxu0 0.0
    %593 = vmatpush2.xpose.msra.mxu0 0.0
    %594 = vmatprep.subr.mxu0 0.0
    %595 = vmatpush2.xpose.msra.mxu0 0.0
    %596 = vmatprep.subr.mxu0 0.0
    %597 = vmatpush2.xpose.msra.mxu0 0.0
    %598 = vmatprep.subr.mxu0 0.0
    %599 = vmatpush2.xpose.msra.mxu0 0.0
    %600 = vmatprep.subr.mxu0 0.0
    %601 = vmatpush2.xpose.msra.mxu0 0.0
    %602 = vmatprep.subr.mxu0 0.0
    %603 = vmatpush2.xpose.msra.mxu0 0.0
    %604 = vmatprep.subr.mxu0 0.0
    %605 = vmatpush2.xpose.msra.mxu0 0.0
    %606 = vmatprep.subr.mxu0 0.0
    %607 = vmatpush2.xpose.msra.mxu0 0.0
    %608 = vmatprep.subr.mxu0 0.0
    %609 = vmatpush2.xpose.msra.mxu0 0.0
    %610 = vmatprep.subr.mxu0 0.0
    %611 = vmatpush2.xpose.msra.mxu0 0.0
    %612 = vmatprep.subr.mxu0 0.0
    %613 = vmatpush2.xpose.msra.mxu0 0.0
    %614 = vmatprep.subr.mxu0 0.0
    %615 = vmatpush2.xpose.msra.mxu0 0.0
    %616 = vmatprep.subr.mxu0 0.0
    %617 = vmatpush2.xpose.msra.mxu0 0.0
    %618 = vmatprep.mubr.f32.mxu0 0.0
    %619 = vmatmul.mubr.f32.gmra.mxu0 %v504
    %v620 = vpop.f32.mrf.mxu0
    %v621 = vadd.f32 %v501, %v620
    %v622 = vpop.f32.mrf.mxu0
    %623 = vdwg.mxu0
    %624 = vst [vmem:[#allocation2] sm:$0x1] %v621
    // Predicated region
    $region18: #{tpu_custom_call.1} parent=1 // pred_check
      _
    $region19: #{tpu_custom_call.1} parent=1 // pred_check_branch
      %626 = sbr.rel (0) target = $region21
    $region20: #{tpu_custom_call.1} parent=1 // pred_region
      %s628 = ssub.s32 16, 16
      %629 = vsyncadd [#allocation3], %s628
      %s631 = sshll.u32 [#allocation2], 4
      %s632 = int_to_ptr.vmem [resolvable:$true] %s631
      %634 = dma.vmem_to_hbm [thread:$0]  %s632, 16, %s4, [#allocation3]
    $region21: #{tpu_custom_call.1} parent=1 // pred_fallthru
      _
    // Predicated region
    $region22: #{tpu_custom_call.1} parent=1 // pred_check
      _
    $region23: #{tpu_custom_call.1} parent=1 // pred_check_branch
      %636 = sbr.rel (0) target = $region25
    $region24: #{tpu_custom_call.1} parent=1 // pred_region
      %637 = dma.done [#allocation3], 16
    $region25: #{tpu_custom_call.1} parent=1 // pred_fallthru
      _
    %638 = vsyncpa [#allocation3], 1

</llo_original>
